<compile_context>
chip_gen: v7x
topology: tpu7x:2x2x1
jax: 0.10.0
libtpu: 0.0.40
codegen_flags: <defaults>
</compile_context>

<pallas_src>
import functools

import jax
import jax.numpy as jnp
from jax import lax
from jax.experimental import pallas as pl
from jax.experimental.pallas import tpu as pltpu


def _roberta_output_kernel(hs_ref, inp_ref, w_ref, consts_ref, o_ref, *, eps):
    """One row tile: [tm, I] @ [I, H] + bias + residual, then LayerNorm(H)."""
    a = hs_ref[...]
    w = w_ref[...]
    if a.dtype != w.dtype:
        # Per-tile activation cast only; the weight was pre-cast once in the
        # wrapper, so no [I, H] cast runs on the VPU every grid step.
        a = a.astype(w.dtype)

    # dense: MXU matmul with f32 accumulation.
    x = jnp.dot(a, w, preferred_element_type=jnp.float32)
    x = x + consts_ref[0:1, :]                       # bias (f32, broadcast)

    # dropout is identity in eval / inference mode; residual add.
    # TODO(synk): training-mode dropout (RNG masking) is not implemented.
    x = x + inp_ref[...].astype(jnp.float32)

    # LayerNorm over the last dim (full H per tile -> no cross-tile reduction).
    # Two-pass (centered) variance for numerical robustness; the extra XLU
    # reduction hides under the MXU / DMA critical path.
    inv_h = jnp.float32(1.0 / x.shape[-1])
    mean = jnp.sum(x, axis=-1, keepdims=True) * inv_h
    d = x - mean
    var = jnp.sum(d * d, axis=-1, keepdims=True) * inv_h
    y = d * lax.rsqrt(var + eps) * consts_ref[1:2, :] + consts_ref[2:3, :]
    o_ref[...] = y.astype(o_ref.dtype)


@functools.lru_cache(maxsize=None)
def _buffered_one_supported():
    """One-time probe: does this JAX build accept pl.Buffered(1) pipeline_mode?

    The probe is tiny and cannot hit genuine VMEM / shape issues, so a broad
    except here never masks real failures of the main kernel call (which runs
    a fixed, already-validated configuration with no try/except)."""
    try:
        def _k(x_ref, o_ref):
            o_ref[...] = x_ref[...] + 1.0
        x = jnp.zeros((8, 128), jnp.float32)
        out = pl.pallas_call(
            _k,
            out_shape=jax.ShapeDtypeStruct((8, 128), jnp.float32),
            grid=(1,),
            in_specs=[pl.BlockSpec((8, 128), lambda i: (0, 0),
                                   pipeline_mode=pl.Buffered(1))],
            out_specs=pl.BlockSpec((8, 128), lambda i: (0, 0)),
        )(x)
        jax.block_until_ready(out)
        return True
    except Exception:
        return False


def _vmem_capacity_bytes():
    """Physical per-core VMEM; conservative 64 MiB if the query is unavailable."""
    try:
        info = pltpu.get_tpu_info()
        cap = getattr(info, "vmem_capacity_bytes", None)
        if cap:
            return int(cap)
    except Exception:
        pass
    return 64 * 1024 * 1024


def _build_call(m_rows, i_dim, h_dim, tm, grid_m, out_dtype, eps,
                vmem_limit_bytes, buffered_one):
    kernel = functools.partial(_roberta_output_kernel, eps=eps)
    # Constant blocks (weight + packed bias/gamma/beta): their block index
    # never changes, so request a single buffer when supported (halves their
    # VMEM footprint — matters most on v7x's 64 MiB per-core VMEM).
    const_kwargs = (dict(pipeline_mode=pl.Buffered(1)) if buffered_one else {})

    in_specs = [
        pl.BlockSpec((tm, i_dim), lambda i: (i, 0)),                     # hs
        pl.BlockSpec((tm, h_dim), lambda i: (i, 0)),                     # residual
        pl.BlockSpec((i_dim, h_dim), lambda i: (0, 0), **const_kwargs),  # weight
        pl.BlockSpec((3, h_dim), lambda i: (0, 0), **const_kwargs),      # b/g/beta
    ]
    return pl.pallas_call(
        kernel,
        out_shape=jax.ShapeDtypeStruct((m_rows, h_dim), out_dtype),
        grid_spec=pltpu.PrefetchScalarGridSpec(
            num_scalar_prefetch=0,
            grid=(grid_m,),
            in_specs=in_specs,
            out_specs=pl.BlockSpec((tm, h_dim), lambda i: (i, 0)),
        ),
        compiler_params=pltpu.CompilerParams(
            dimension_semantics=("parallel",),   # rows independent; v7x 2 TCs
            vmem_limit_bytes=vmem_limit_bytes,
        ),
    )


def roberta_output(hidden_states, input_tensor, weight, bias, gamma, beta, *,
                   eps=1e-12, tm=512, mxu_dtype=jnp.bfloat16):
    """Fused RobertaOutput forward pass.

    hidden_states: [B, S, I]  (output of the intermediate MLP)
    input_tensor:  [B, S, H]  (residual)
    weight:        [I, H]     (torch nn.Linear(I, H).weight transposed)
    bias / gamma / beta: [H]
    Returns [B, S, H] in hidden_states.dtype.

    tm is the row-tile tuning knob (256-512 on v5e, 512-1024 on v6e/v7x).
    mxu_dtype=jnp.bfloat16 (default) runs the matmul on the native-bf16 MXU
    with f32 accumulation; pass mxu_dtype=None for an exact f32 matmul.  For
    a fully HBM-bound bf16 path (v7x), feed bf16 hidden_states/input_tensor.
    """
    B, S, I = hidden_states.shape
    H = input_tensor.shape[-1]
    M = B * S

    hs2d = hidden_states.reshape(M, I)
    in2d = input_tensor.reshape(M, H)

    # Weight cast happens once here (not per grid step inside the kernel);
    # bias/gamma/beta are packed into one sublane-aligned f32 constant block.
    if mxu_dtype is not None and weight.dtype != mxu_dtype:
        weight = weight.astype(mxu_dtype)
    consts = jnp.stack([bias, gamma, beta]).astype(jnp.float32)      # [3, H]

    # Row tile: multiple of 8 (sublane granularity).  Guarantee >= 2 grid
    # steps when there is enough work so both v7x TensorCores get a share via
    # "parallel" dimension semantics.  No wrapper-side padding: Pallas masks
    # the ragged last block; rows are independent, so garbage in the padded
    # region only affects rows whose output is dropped anyway.
    m8 = ((M + 7) // 8) * 8
    tm_eff = max(8, min(int(tm), m8))
    tm_eff = (tm_eff // 8) * 8
    if m8 >= 512 and pl.cdiv(M, tm_eff) < 2:
        tm_eff = ((pl.cdiv(m8, 2) + 7) // 8) * 8
    grid_m = pl.cdiv(M, tm_eff)

    buffered_one = _buffered_one_supported()

    # Generation-aware scoped-VMEM budget: query physical capacity (128 MiB on
    # v5e/v6e, 64 MiB on v7x) and leave ~15% headroom for Mosaic-internal
    # scratch and semaphores.
    hs_item = jnp.dtype(hs2d.dtype).itemsize
    in_item = jnp.dtype(in2d.dtype).itemsize
    w_item = jnp.dtype(weight.dtype).itemsize
    out_item = hs_item
    w_bufs = 1 if buffered_one else 2
    est = (I * H * w_item * w_bufs            # resident weight
           + 2 * tm_eff * I * hs_item         # hs tiles (double-buffered)
           + 2 * tm_eff * H * in_item         # residual tiles
           + 2 * tm_eff * H * out_item        # output tiles
           + 6 * tm_eff * H * 4               # f32 temporaries headroom
           + 2 * 8 * H * 4)                   # packed constants
    vmem_cap = int(_vmem_capacity_bytes() * 0.85)
    vmem_limit = int(min(max(int(1.5 * est), 32 * 1024 * 1024), vmem_cap))

    call = _build_call(M, I, H, tm_eff, grid_m, hidden_states.dtype, eps,
                       vmem_limit, buffered_one)
    out2d = call(hs2d, in2d, weight, consts)
    return out2d.reshape(B, S, H)


def _reference(hidden_states, input_tensor, weight, bias, gamma, beta, eps):
    B, S, I = hidden_states.shape
    H = input_tensor.shape[-1]
    x = (hidden_states.reshape(-1, I).astype(jnp.float32)
         @ weight.astype(jnp.float32) + bias)
    x = x + input_tensor.reshape(-1, H).astype(jnp.float32)
    mu = x.mean(-1, keepdims=True)
    var = ((x - mu) ** 2).mean(-1, keepdims=True)
    y = ((x - mu) / jnp.sqrt(var + eps)) * gamma + beta
    return y.reshape(B, S, H)


if __name__ == "__main__":
    # Small config: intermediate_size=256, hidden_size=128.
    I, H = 256, 128
    eps = 1e-12  # HuggingFace RoBERTa layer_norm_eps default

    key = jax.random.PRNGKey(0)
    k_hs, k_in, k_w, k_b, k_g, k_be, k_hs2, k_in2 = jax.random.split(key, 8)

    # nn.Linear(I, H): torch weight is [H, I]; we store it transposed [I, H].
    weight = jax.random.normal(k_w, (I, H), dtype=jnp.float32) / jnp.sqrt(I)
    bias = jax.random.normal(k_b, (H,), dtype=jnp.float32) * 0.01
    gamma = 1.0 + 0.1 * jax.random.normal(k_g, (H,), dtype=jnp.float32)
    beta = 0.1 * jax.random.normal(k_be, (H,), dtype=jnp.float32)

    B, S = 2, 8
    hidden_states = jax.random.normal(k_hs, (B, S, I), dtype=jnp.float32)
    input_tensor = jax.random.normal(k_in, (B, S, H), dtype=jnp.float32)
    ref = _reference(hidden_states, input_tensor, weight, bias, gamma, beta, eps)

    # Case 1a: exact f32 matmul path.
    out = roberta_output(hidden_states, input_tensor, weight, bias, gamma,
                         beta, eps=eps, mxu_dtype=None)
    out = jax.block_until_ready(out)
    assert jnp.allclose(out, ref, atol=1e-4, rtol=1e-4), "mismatch (f32 path)"

    # Case 1b: default bf16-MXU path (f32 accumulation; inputs rounded to bf16).
    out_bf = roberta_output(hidden_states, input_tensor, weight, bias, gamma,
                            beta, eps=eps)
    out_bf = jax.block_until_ready(out_bf)
    assert jnp.allclose(out_bf, ref, atol=5e-2, rtol=5e-2), "mismatch (bf16 path)"

    # Case 2: ragged row count (M = 15) — exercises the masked last row tile.
    B2, S2 = 3, 5
    hs2 = jax.random.normal(k_hs2, (B2, S2, I), dtype=jnp.float32)
    in2 = jax.random.normal(k_in2, (B2, S2, H), dtype=jnp.float32)
    out2 = roberta_output(hs2, in2, weight, bias, gamma, beta, eps=eps,
                          mxu_dtype=None)
    out2 = jax.block_until_ready(out2)
    ref2 = _reference(hs2, in2, weight, bias, gamma, beta, eps)
    assert jnp.allclose(out2, ref2, atol=1e-4, rtol=1e-4), "mismatch (ragged)"

    print("KERNEL_OK")
</pallas_src>

<mosaic_0001>
module attributes {stable_mosaic.version = 11 : i64} {
  func.func @_k(%arg0: i32, %arg1: memref<8x128xf32, #tpu.memory_space<vmem>>, %arg2: memref<8x128xf32, #tpu.memory_space<vmem>>) attributes {dimension_semantics = [#tpu.dimension_semantics<arbitrary>], iteration_bounds = array<i64: 1>, scalar_prefetch = 0 : i64, scratch_operands = 0 : i64, tpu.core_type = #tpu.core_type<tc>, window_params = [{pipeline_mode = #tpu.pipeline_mode<synchronous>, transform_indices = @transform_0, window_bounds = array<i64: 8, 128>}, {pipeline_mode = #tpu.pipeline_mode<synchronous>, transform_indices = @transform_1, window_bounds = array<i64: 8, 128>}]} {
    %c0 = arith.constant 0 : index
    %c0_0 = arith.constant 0 : index
    %0 = vector.load %arg1[%c0, %c0_0] : memref<8x128xf32, #tpu.memory_space<vmem>>, vector<8x128xf32>
    %cst = arith.constant 1.000000e+00 : f32
    %1 = vector.broadcast %cst : f32 to vector<8x128xf32>
    %2 = arith.addf %0, %1 : vector<8x128xf32>
    %c0_1 = arith.constant 0 : index
    %c0_2 = arith.constant 0 : index
    %3 = vector.load %arg2[%c0_1, %c0_2] : memref<8x128xf32, #tpu.memory_space<vmem>>, vector<8x128xf32>
    tpu.vector_store %arg2[%c0_1, %c0_2], %2 {strides = array<i32>} : memref<8x128xf32, #tpu.memory_space<vmem>>, vector<8x128xf32>,
    return
  }
  func.func @transform_0(%arg0: i32) -> (i32, i32) {
    %c0_i32 = arith.constant 0 : i32
    %c0_i32_0 = arith.constant 0 : i32
    %c0_i32_1 = arith.constant 0 : i32
    return %c0_i32, %c0_i32_0 : i32, i32
  }
  func.func @transform_1(%arg0: i32) -> (i32, i32) {
    %c0_i32 = arith.constant 0 : i32
    %c0_i32_0 = arith.constant 0 : i32
    %c0_i32_1 = arith.constant 0 : i32
    return %c0_i32, %c0_i32_0 : i32, i32
  }
}

module attributes {stable_mosaic.version = 11 : i64} {
  func.func @_roberta_output_kernel(%arg0: i32, %arg1: memref<16x256xf32, #tpu.memory_space<vmem>>, %arg2: memref<16x128xf32, #tpu.memory_space<vmem>>, %arg3: memref<256x128xf32, #tpu.memory_space<vmem>>, %arg4: memref<3x128xf32, #tpu.memory_space<vmem>>, %arg5: memref<16x128xf32, #tpu.memory_space<vmem>>) attributes {dimension_semantics = [#tpu.dimension_semantics<parallel>], iteration_bounds = array<i64: 1>, scalar_prefetch = 0 : i64, scratch_operands = 0 : i64, tpu.core_type = #tpu.core_type<tc>, window_params = [{transform_indices = @transform_0, window_bounds = array<i64: 16, 256>}, {transform_indices = @transform_1, window_bounds = array<i64: 16, 128>}, {pipeline_mode = #tpu.pipeline_mode<synchronous>, transform_indices = @transform_2, window_bounds = array<i64: 256, 128>}, {pipeline_mode = #tpu.pipeline_mode<synchronous>, transform_indices = @transform_3, window_bounds = array<i64: 3, 128>}, {transform_indices = @transform_4, window_bounds = array<i64: 16, 128>}]} {
    %c0 = arith.constant 0 : index
    %c0_0 = arith.constant 0 : index
    %0 = vector.load %arg1[%c0, %c0_0] : memref<16x256xf32, #tpu.memory_space<vmem>>, vector<16x256xf32>
    %c0_1 = arith.constant 0 : index
    %c0_2 = arith.constant 0 : index
    %1 = vector.load %arg3[%c0_1, %c0_2] : memref<256x128xf32, #tpu.memory_space<vmem>>, vector<256x128xf32>
    %cst = arith.constant dense<0.000000e+00> : vector<16x128xf32>
    %2 = tpu.matmul %0, %1, %cst {dimension_numbers = #tpu.dot_dimension_numbers<[1], [0], [0], [1], [0, 0, 1, 1], [], []>} : vector<16x256xf32>, vector<256x128xf32>, vector<16x128xf32> -> vector<16x128xf32>
    %c0_3 = arith.constant 0 : index
    %c0_4 = arith.constant 0 : index
    %3 = vector.load %arg4[%c0_3, %c0_4] : memref<3x128xf32, #tpu.memory_space<vmem>>, vector<1x128xf32>
    %4 = vector.broadcast %3 : vector<1x128xf32> to vector<16x128xf32>
    %5 = arith.addf %2, %4 : vector<16x128xf32>
    %c0_5 = arith.constant 0 : index
    %c0_6 = arith.constant 0 : index
    %6 = vector.load %arg2[%c0_5, %c0_6] : memref<16x128xf32, #tpu.memory_space<vmem>>, vector<16x128xf32>
    %7 = arith.addf %5, %6 : vector<16x128xf32>
    %cst_7 = arith.constant dense<0.000000e+00> : vector<16xf32>
    %8 = vector.multi_reduction <add>, %7, %cst_7 [1] : vector<16x128xf32> to vector<16xf32>
    %9 = vector.shape_cast %8 : vector<16xf32> to vector<16x1xf32>
    %cst_8 = arith.constant 7.812500e-03 : f32
    %10 = vector.broadcast %cst_8 : f32 to vector<16x1xf32>
    %11 = arith.mulf %9, %10 : vector<16x1xf32>
    %12 = vector.broadcast %11 : vector<16x1xf32> to vector<16x128xf32>
    %13 = arith.subf %7, %12 : vector<16x128xf32>
    %14 = arith.mulf %13, %13 : vector<16x128xf32>
    %cst_9 = arith.constant dense<0.000000e+00> : vector<16xf32>
    %15 = vector.multi_reduction <add>, %14, %cst_9 [1] : vector<16x128xf32> to vector<16xf32>
    %16 = vector.shape_cast %15 : vector<16xf32> to vector<16x1xf32>
    %cst_10 = arith.constant 7.812500e-03 : f32
    %17 = vector.broadcast %cst_10 : f32 to vector<16x1xf32>
    %18 = arith.mulf %16, %17 : vector<16x1xf32>
    %cst_11 = arith.constant 9.99999996E-13 : f32
    %19 = vector.broadcast %cst_11 : f32 to vector<16x1xf32>
    %20 = arith.addf %18, %19 : vector<16x1xf32>
    %21 = math.rsqrt %20 : vector<16x1xf32>
    %22 = vector.broadcast %21 : vector<16x1xf32> to vector<16x128xf32>
    %23 = arith.mulf %13, %22 : vector<16x128xf32>
    %c1 = arith.constant 1 : index
    %c0_12 = arith.constant 0 : index
    %24 = vector.load %arg4[%c1, %c0_12] : memref<3x128xf32, #tpu.memory_space<vmem>>, vector<1x128xf32>
    %25 = vector.broadcast %24 : vector<1x128xf32> to vector<16x128xf32>
    %26 = arith.mulf %23, %25 : vector<16x128xf32>
    %c2 = arith.constant 2 : index
    %c0_13 = arith.constant 0 : index
    %27 = vector.load %arg4[%c2, %c0_13] : memref<3x128xf32, #tpu.memory_space<vmem>>, vector<1x128xf32>
    %28 = vector.broadcast %27 : vector<1x128xf32> to vector<16x128xf32>
    %29 = arith.addf %26, %28 : vector<16x128xf32>
    %c0_14 = arith.constant 0 : index
    %c0_15 = arith.constant 0 : index
    %30 = vector.load %arg5[%c0_14, %c0_15] : memref<16x128xf32, #tpu.memory_space<vmem>>, vector<16x128xf32>
    tpu.vector_store %arg5[%c0_14, %c0_15], %29 {strides = array<i32>} : memref<16x128xf32, #tpu.memory_space<vmem>>, vector<16x128xf32>,
    return
  }
  func.func @transform_0(%arg0: i32) -> (i32, i32) {
    %c0_i32 = arith.constant 0 : i32
    %c0_i32_0 = arith.constant 0 : i32
    return %arg0, %c0_i32 : i32, i32
  }
  func.func @transform_1(%arg0: i32) -> (i32, i32) {
    %c0_i32 = arith.constant 0 : i32
    %c0_i32_0 = arith.constant 0 : i32
    return %arg0, %c0_i32 : i32, i32
  }
  func.func @transform_2(%arg0: i32) -> (i32, i32) {
    %c0_i32 = arith.constant 0 : i32
    %c0_i32_0 = arith.constant 0 : i32
    %c0_i32_1 = arith.constant 0 : i32
    return %c0_i32, %c0_i32_0 : i32, i32
  }
  func.func @transform_3(%arg0: i32) -> (i32, i32) {
    %c0_i32 = arith.constant 0 : i32
    %c0_i32_0 = arith.constant 0 : i32
    %c0_i32_1 = arith.constant 0 : i32
    return %c0_i32, %c0_i32_0 : i32, i32
  }
  func.func @transform_4(%arg0: i32) -> (i32, i32) {
    %c0_i32 = arith.constant 0 : i32
    %c0_i32_0 = arith.constant 0 : i32
    return %arg0, %c0_i32 : i32, i32
  }
}

</mosaic_0001>

<llo_original>
// kernel: tpu_custom_call.1
$region0: #{tpu_custom_call.1}
  #allocation0 [shape = 'u32[]', space=smem, size = 0x4, offset = 0x4, fixed_abs, tag = 'smem constant byte address 0x4 - core index']
  #allocation1 [shape = 'u32[144,128]{1,0:T(1,128)}', space=vmem, size = 0x12000, scoped, tag = 'internal scratch']
  %s0 = inlined_call_operand.hbm [shape: f32[8,128], index: 0, kind: input, shape index: {}]
  %s1 = inlined_call_operand.hbm [shape: f32[8,128], index: 1, kind: output, shape index: {}]
  %s2 = sld [smem:[#allocation0]]
  $region18: #{tpu_custom_call.1} parent=0
    _
  %s4 = ssub.s32 1, %s2
  %s5 = scalar_select 0, %s4, %s2
  $region1: #{tpu_custom_call.1} parent=0
    #allocation2 [shape = 'u8[4096]{0}', space=vmem, size = 0x1000, scoped, tag = 'input window, operand 0, single buffered']
    #allocation3 [shape = 's32[1]{0}', space=sflag, size = 0x4, scoped, tag = 'scoped memory for tpu_custom_call.1']
    #allocation4 [shape = 's32[1]{0}', space=sflag, size = 0x4, scoped, tag = 'scoped memory for tpu_custom_call.1']
    #allocation5 [shape = 'u8[4096]{0}', space=vmem, size = 0x1000, scoped, tag = 'output window, operand 0, single buffered']
    %6 = vsyncpa [#allocation3], 0
    %7 = vsyncpa [#allocation4], 0
    // Predicated region
    $region2: #{tpu_custom_call.1} parent=1 // pred_check
      _
    $region3: #{tpu_custom_call.1} parent=1 // pred_check_branch
      %9 = sbr.rel (0) target = $region5
    $region4: #{tpu_custom_call.1} parent=1 // pred_region
      %s11 = ssub.s32 128, 128
      %12 = vsyncadd [#allocation3], %s11
      %s14 = sshll.u32 [#allocation2], 4
      %s15 = int_to_ptr.vmem [resolvable:$true] %s14
      %17 = dma.hbm_to_vmem [thread:$0]  %s0, 128, %s15, [#allocation3]
    $region5: #{tpu_custom_call.1} parent=1 // pred_fallthru
      _
    // Predicated region
    $region6: #{tpu_custom_call.1} parent=1 // pred_check
      _
    $region7: #{tpu_custom_call.1} parent=1 // pred_check_branch
      %19 = sbr.rel (0) target = $region9
    $region8: #{tpu_custom_call.1} parent=1 // pred_region
      %20 = dma.done [#allocation3], 128
    $region9: #{tpu_custom_call.1} parent=1 // pred_fallthru
      _
    %v21 = vld [vmem:[#allocation2] sm:$0xff]
    %v22 = vadd.f32 %v21, 1.0
    %23 = vst [vmem:[#allocation5] sm:$0xff] %v22
    // Predicated region
    $region10: #{tpu_custom_call.1} parent=1 // pred_check
      _
    $region11: #{tpu_custom_call.1} parent=1 // pred_check_branch
      %25 = sbr.rel (0) target = $region13
    $region12: #{tpu_custom_call.1} parent=1 // pred_region
      %s27 = ssub.s32 128, 128
      %28 = vsyncadd [#allocation4], %s27
      %s30 = sshll.u32 [#allocation5], 4
      %s31 = int_to_ptr.vmem [resolvable:$true] %s30
      %33 = dma.vmem_to_hbm [thread:$0]  %s31, 128, %s1, [#allocation4]
    $region13: #{tpu_custom_call.1} parent=1 // pred_fallthru
      _
    // Predicated region
    $region14: #{tpu_custom_call.1} parent=1 // pred_check
      _
    $region15: #{tpu_custom_call.1} parent=1 // pred_check_branch
      %35 = sbr.rel (0) target = $region17
    $region16: #{tpu_custom_call.1} parent=1 // pred_region
      %36 = dma.done [#allocation4], 128
    $region17: #{tpu_custom_call.1} parent=1 // pred_fallthru
      _
    %37 = vsyncpa [#allocation3], 1
    %38 = vsyncpa [#allocation4], 1

// kernel: tpu_custom_call.1
$region0: #{tpu_custom_call.1}
  #allocation0 [shape = 'u32[]', space=smem, size = 0x4, offset = 0x4, fixed_abs, tag = 'smem constant byte address 0x4 - core index']
  #allocation1 [shape = 'u32[144,128]{1,0:T(1,128)}', space=vmem, size = 0x12000, scoped, tag = 'internal scratch']
  %s0 = inlined_call_operand.hbm [shape: f32[16,256], index: 0, kind: input, shape index: {}]
  %s1 = inlined_call_operand.hbm [shape: f32[16,128], index: 1, kind: input, shape index: {}]
  %s2 = inlined_call_operand.hbm [shape: f32[256,128], index: 2, kind: input, shape index: {}]
  %s3 = inlined_call_operand.vmem [shape: f32[3,128], index: 3, kind: input, shape index: {}]
  %s4 = inlined_call_operand.hbm [shape: f32[16,128], index: 4, kind: output, shape index: {}]
  %s5 = sld [smem:[#allocation0]]
  $region38: #{tpu_custom_call.1} parent=0
    _
  %s7 = ssub.s32 1, %s5
  %s8 = scalar_select 0, %s7, %s5
  $region1: #{tpu_custom_call.1} parent=0
    #allocation2 [shape = 'u8[16384]{0}', space=vmem, size = 0x4000, scoped, tag = 'input window, operand 0, single buffered']
    #allocation3 [shape = 's32[1]{0}', space=sflag, size = 0x4, scoped, tag = 'scoped memory for tpu_custom_call.1']
    #allocation4 [shape = 's32[1]{0}', space=sflag, size = 0x4, scoped, tag = 'scoped memory for tpu_custom_call.1']
    #allocation5 [shape = 'u8[8192]{0}', space=vmem, size = 0x2000, scoped, tag = 'input window, operand 1, single buffered']
    #allocation6 [shape = 's32[1]{0}', space=sflag, size = 0x4, scoped, tag = 'scoped memory for tpu_custom_call.1']
    #allocation7 [shape = 'u8[131072]{0}', space=vmem, size = 0x20000, scoped, tag = 'input window, operand 2, single buffered']
    #allocation8 [shape = 'u8[8192]{0}', space=vmem, size = 0x2000, scoped, tag = 'output window, operand 0, single buffered']
    %9 = vsyncpa [#allocation3], 0
    %10 = vsyncpa [#allocation6], 0
    %11 = vsyncpa [#allocation4], 0
    // Predicated region
    $region2: #{tpu_custom_call.1} parent=1 // pred_check
      _
    $region3: #{tpu_custom_call.1} parent=1 // pred_check_branch
      %13 = sbr.rel (0) target = $region5
    $region4: #{tpu_custom_call.1} parent=1 // pred_region
      %s15 = ssub.s32 512, 512
      %16 = vsyncadd [#allocation3], %s15
      %s17 = sshll.u32 [#allocation2], 4
      %s18 = int_to_ptr.vmem [resolvable:$true] %s17
      %23 = dma.hbm_to_vmem [thread:$0]  %s0, 512, %s18, [#allocation3], 256, 256, 16
    $region5: #{tpu_custom_call.1} parent=1 // pred_fallthru
      _
    // Predicated region
    $region6: #{tpu_custom_call.1} parent=1 // pred_check
      _
    $region7: #{tpu_custom_call.1} parent=1 // pred_check_branch
      %25 = sbr.rel (0) target = $region9
    $region8: #{tpu_custom_call.1} parent=1 // pred_region
      %s27 = ssub.s32 256, 256
      %28 = vsyncadd [#allocation6], %s27
      %s29 = sshll.u32 [#allocation5], 4
      %s30 = int_to_ptr.vmem [resolvable:$true] %s29
      %35 = dma.hbm_to_vmem [thread:$0]  %s1, 256, %s30, [#allocation6], 128, 128, 8
    $region9: #{tpu_custom_call.1} parent=1 // pred_fallthru
      _
    // Predicated region
    $region10: #{tpu_custom_call.1} parent=1 // pred_check
      _
    $region11: #{tpu_custom_call.1} parent=1 // pred_check_branch
      %37 = sbr.rel (0) target = $region13
    $region12: #{tpu_custom_call.1} parent=1 // pred_region
      %s39 = ssub.s32 4096, 4096
      %40 = vsyncadd [#allocation6], %s39
      %s41 = sshll.u32 [#allocation7], 4
      %s42 = int_to_ptr.vmem [resolvable:$true] %s41
      %47 = dma.hbm_to_vmem [thread:$0]  %s2, 4096, %s42, [#allocation6], 128, 128, 8
    $region13: #{tpu_custom_call.1} parent=1 // pred_fallthru
      _
    // Predicated region
    $region14: #{tpu_custom_call.1} parent=1 // pred_check
      _
    $region15: #{tpu_custom_call.1} parent=1 // pred_check_branch
      %49 = sbr.rel (0) target = $region17
    $region16: #{tpu_custom_call.1} parent=1 // pred_region
      _
    $region17: #{tpu_custom_call.1} parent=1 // pred_fallthru
      _
    // Predicated region
    $region18: #{tpu_custom_call.1} parent=1 // pred_check
      _
    $region19: #{tpu_custom_call.1} parent=1 // pred_check_branch
      %51 = sbr.rel (0) target = $region21
    $region20: #{tpu_custom_call.1} parent=1 // pred_region
      %52 = dma.done [#allocation3], 512
    $region21: #{tpu_custom_call.1} parent=1 // pred_fallthru
      _
    // Predicated region
    $region22: #{tpu_custom_call.1} parent=1 // pred_check
      _
    $region23: #{tpu_custom_call.1} parent=1 // pred_check_branch
      %54 = sbr.rel (0) target = $region25
    $region24: #{tpu_custom_call.1} parent=1 // pred_region
      %55 = dma.done [#allocation6], 256
    $region25: #{tpu_custom_call.1} parent=1 // pred_fallthru
      _
    // Predicated region
    $region26: #{tpu_custom_call.1} parent=1 // pred_check
      _
    $region27: #{tpu_custom_call.1} parent=1 // pred_check_branch
      %57 = sbr.rel (0) target = $region29
    $region28: #{tpu_custom_call.1} parent=1 // pred_region
      %58 = dma.done [#allocation6], 4096
    $region29: #{tpu_custom_call.1} parent=1 // pred_fallthru
      _
    %v59 = vld [vmem:[#allocation2] sm:$0xff]
    %v60 = vld [vmem:[#allocation2 + $0x8] sm:$0xff]
    %v61 = vld [vmem:[#allocation2 + $0x10] sm:$0xff]
    %v62 = vld [vmem:[#allocation2 + $0x18] sm:$0xff]
    %v63 = vld [vmem:[#allocation7] sm:$0xff]
    %v64 = vld [vmem:[#allocation7 + $0x8] sm:$0xff]
    %v65 = vld [vmem:[#allocation7 + $0x10] sm:$0xff]
    %v66 = vld [vmem:[#allocation7 + $0x18] sm:$0xff]
    %v67 = vld [vmem:[#allocation7 + $0x20] sm:$0xff]
    %v68 = vld [vmem:[#allocation7 + $0x28] sm:$0xff]
    %v69 = vld [vmem:[#allocation7 + $0x30] sm:$0xff]
    %v70 = vld [vmem:[#allocation7 + $0x38] sm:$0xff]
    %v71 = vld [vmem:[#allocation7 + $0x40] sm:$0xff]
    %v72 = vld [vmem:[#allocation7 + $0x48] sm:$0xff]
    %v73 = vld [vmem:[#allocation7 + $0x50] sm:$0xff]
    %v74 = vld [vmem:[#allocation7 + $0x58] sm:$0xff]
    %v75 = vld [vmem:[#allocation7 + $0x60] sm:$0xff]
    %v76 = vld [vmem:[#allocation7 + $0x68] sm:$0xff]
    %v77 = vld [vmem:[#allocation7 + $0x70] sm:$0xff]
    %v78 = vld [vmem:[#allocation7 + $0x78] sm:$0xff]
    %v79 = vld [vmem:[#allocation7 + $0x80] sm:$0xff]
    %v80 = vld [vmem:[#allocation7 + $0x88] sm:$0xff]
    %v81 = vld [vmem:[#allocation7 + $0x90] sm:$0xff]
    %v82 = vld [vmem:[#allocation7 + $0x98] sm:$0xff]
    %v83 = vld [vmem:[#allocation7 + $0xa0] sm:$0xff]
    %v84 = vld [vmem:[#allocation7 + $0xa8] sm:$0xff]
    %v85 = vld [vmem:[#allocation7 + $0xb0] sm:$0xff]
    %v86 = vld [vmem:[#allocation7 + $0xb8] sm:$0xff]
    %v87 = vld [vmem:[#allocation7 + $0xc0] sm:$0xff]
    %v88 = vld [vmem:[#allocation7 + $0xc8] sm:$0xff]
    %v89 = vld [vmem:[#allocation7 + $0xd0] sm:$0xff]
    %v90 = vld [vmem:[#allocation7 + $0xd8] sm:$0xff]
    %v91 = vld [vmem:[#allocation7 + $0xe0] sm:$0xff]
    %v92 = vld [vmem:[#allocation7 + $0xe8] sm:$0xff]
    %v93 = vld [vmem:[#allocation7 + $0xf0] sm:$0xff]
    %v94 = vld [vmem:[#allocation7 + $0xf8] sm:$0xff]
    %v95 = vld [vmem:[%s3] sm:$0x1]
    %v96 = vlaneseq
    %v97 = vshrl.u32 %v96, 7
    %v98 = vsub.s32 0, %v97
    %v99 = vrot.slane %v95, %v98
    %100 = vmatprep.subr.mxu0 0.0
    %101 = vmatpush1.msra.mxu0 %v63
    %102 = vmatprep.subr.mxu0 0.0
    %103 = vmatpush1.msra.mxu0 %v64
    %104 = vmatprep.subr.mxu0 0.0
    %105 = vmatpush1.msra.mxu0 %v65
    %106 = vmatprep.subr.mxu0 0.0
    %107 = vmatpush1.msra.mxu0 %v66
    %108 = vmatprep.subr.mxu0 0.0
    %109 = vmatpush1.msra.mxu0 %v67
    %110 = vmatprep.subr.mxu0 0.0
    %111 = vmatpush1.msra.mxu0 %v68
    %112 = vmatprep.subr.mxu0 0.0
    %113 = vmatpush1.msra.mxu0 %v69
    %114 = vmatprep.subr.mxu0 0.0
    %115 = vmatpush1.msra.mxu0 %v70
    %116 = vmatprep.subr.mxu0 0.0
    %117 = vmatpush1.msra.mxu0 %v71
    %118 = vmatprep.subr.mxu0 0.0
    %119 = vmatpush1.msra.mxu0 %v72
    %120 = vmatprep.subr.mxu0 0.0
    %121 = vmatpush1.msra.mxu0 %v73
    %122 = vmatprep.subr.mxu0 0.0
    %123 = vmatpush1.msra.mxu0 %v74
    %124 = vmatprep.subr.mxu0 0.0
    %125 = vmatpush1.msra.mxu0 %v75
    %126 = vmatprep.subr.mxu0 0.0
    %127 = vmatpush1.msra.mxu0 %v76
    %128 = vmatprep.subr.mxu0 0.0
    %129 = vmatpush1.msra.mxu0 %v77
    %130 = vmatprep.subr.mxu0 0.0
    %131 = vmatpush1.msra.mxu0 %v78
    %132 = vmatprep.subr.mxu0 0.0
    %133 = vmatpush1.msra.mxu0 %v79
    %134 = vmatprep.subr.mxu0 0.0
    %135 = vmatpush1.msra.mxu0 %v80
    %136 = vmatprep.subr.mxu0 0.0
    %137 = vmatpush1.msra.mxu0 %v81
    %138 = vmatprep.subr.mxu0 0.0
    %139 = vmatpush1.msra.mxu0 %v82
    %140 = vmatprep.subr.mxu0 0.0
    %141 = vmatpush1.msra.mxu0 %v83
    %142 = vmatprep.subr.mxu0 0.0
    %143 = vmatpush1.msra.mxu0 %v84
    %144 = vmatprep.subr.mxu0 0.0
    %145 = vmatpush1.msra.mxu0 %v85
    %146 = vmatprep.subr.mxu0 0.0
    %147 = vmatpush1.msra.mxu0 %v86
    %148 = vmatprep.subr.mxu0 0.0
    %149 = vmatpush1.msra.mxu0 %v87
    %150 = vmatprep.subr.mxu0 0.0
    %151 = vmatpush1.msra.mxu0 %v88
    %152 = vmatprep.subr.mxu0 0.0
    %153 = vmatpush1.msra.mxu0 %v89
    %154 = vmatprep.subr.mxu0 0.0
    %155 = vmatpush1.msra.mxu0 %v90
    %156 = vmatprep.subr.mxu0 0.0
    %157 = vmatpush1.msra.mxu0 %v91
    %158 = vmatprep.subr.mxu0 0.0
    %159 = vmatpush1.msra.mxu0 %v92
    %160 = vmatprep.subr.mxu0 0.0
    %161 = vmatpush1.msra.mxu0 %v93
    %162 = vmatprep.subr.mxu0 0.0
    %163 = vmatpush1.msra.mxu0 %v94
    %164 = vmatprep.mubr.f32.mxu0 %v60
    %165 = vmatmul.mubr.f32.gmra.mrb[0].mxu0 %v59
    %v166 = vpop.f32.mrb[0].mxu0
    %v167 = vadd.f32 %v99, %v166
    %v168 = vpop.f32.mrb[0].mxu0
    %169 = vmatprep.mubr.f32.mxu0 %v62
    %170 = vmatmul.mubr.f32.gmra.mrb[0].mxu0 %v61
    %v171 = vpop.f32.mrb[0].mxu0
    %v172 = vadd.f32 %v99, %v171
    %v173 = vpop.f32.mrb[0].mxu0
    %174 = vdwg.mxu0
    %v175 = vld [vmem:[#allocation5] sm:$0xff]
    %v176 = vld [vmem:[#allocation5 + $0x8] sm:$0xff]
    %v177 = vadd.f32 %v167, %v175
    %v178 = vadd.f32 %v172, %v176
    %179 = vadd.xlane.f32.xlu0 %v177
    %v180 = vpop.xlane.xlu0 %179
    %181 = vadd.xlane.f32.xlu0 %v178
    %v182 = vpop.xlane.xlu0 %181
    %v183 = vmul.f32 %v180, 0.0078125
    %v184 = vmul.f32 %v182, 0.0078125
    %v185 = vsub.f32 %v177, %v183
    %v186 = vsub.f32 %v178, %v184
    %v187 = vmul.f32 %v185, %v185
    %v188 = vmul.f32 %v186, %v186
    %189 = vadd.xlane.f32.xlu0 %v187
    %v190 = vpop.xlane.xlu0 %189
    %191 = vadd.xlane.f32.xlu0 %v188
    %v192 = vpop.xlane.xlu0 %191
    %v193 = vmul.f32 %v190, 0.0078125
    %v194 = vmul.f32 %v192, 0.0078125
    %v195 = vadd.f32 %v193, 1e-12
    %v196 = vadd.f32 %v194, 1e-12
    %v197 = vrsqrt.pop %v195
    %v198 = vrsqrt.pop %v196
    %v199 = vmul.f32 %v185, %v197
    %v200 = vmul.f32 %v186, %v198
    %v201 = vld [vmem:[%s3 + $0x1] sm:$0x1]
    %v202 = vlaneseq
    %v203 = vshrl.u32 %v202, 7
    %v204 = vsub.s32 0, %v203
    %v205 = vrot.slane %v201, %v204
    %v206 = vmul.f32 %v199, %v205
    %v207 = vmul.f32 %v200, %v205
    %v208 = vld [vmem:[%s3 + $0x2] sm:$0x1]
    %v209 = vlaneseq
    %v210 = vshrl.u32 %v209, 7
    %v211 = vsub.s32 0, %v210
    %v212 = vrot.slane %v208, %v211
    %v213 = vadd.f32 %v206, %v212
    %v214 = vadd.f32 %v207, %v212
    %215 = vst [vmem:[#allocation8] sm:$0xff] %v213
    %216 = vst [vmem:[#allocation8 + $0x8] sm:$0xff] %v214
    // Predicated region
    $region30: #{tpu_custom_call.1} parent=1 // pred_check
      _
    $region31: #{tpu_custom_call.1} parent=1 // pred_check_branch
      %218 = sbr.rel (0) target = $region33
    $region32: #{tpu_custom_call.1} parent=1 // pred_region
      %s220 = ssub.s32 256, 256
      %221 = vsyncadd [#allocation4], %s220
      %s222 = sshll.u32 [#allocation8], 4
      %s223 = int_to_ptr.vmem [resolvable:$true] %s222
      %228 = dma.vmem_to_hbm [thread:$0]  %s223, 256, %s4, [#allocation4], 128, 128, 8
    $region33: #{tpu_custom_call.1} parent=1 // pred_fallthru
      _
    // Predicated region
    $region34: #{tpu_custom_call.1} parent=1 // pred_check
      _
    $region35: #{tpu_custom_call.1} parent=1 // pred_check_branch
      %230 = sbr.rel (0) target = $region37
    $region36: #{tpu_custom_call.1} parent=1 // pred_region
      %231 = dma.done [#allocation4], 256
    $region37: #{tpu_custom_call.1} parent=1 // pred_fallthru
      _
    %232 = vsyncpa [#allocation3], 1
    %233 = vsyncpa [#allocation6], 1
    %234 = vsyncpa [#allocation4], 1

</llo_original>
